<compile_context>
chip_gen: v7x
topology: tpu7x:2x2x1
jax: 0.10.0
libtpu: 0.0.40
codegen_flags: <defaults>
</compile_context>

<pallas_src>
import math

import jax
import jax.numpy as jnp
from jax.experimental import pallas as pl
from jax.experimental.pallas import tpu as pltpu

_H = 64            # hidden width 50 zero-padded to 64 (ReLU(0)=0, results unchanged)
_LANE_CHUNK = 512  # in-kernel lane chunk for bounded live ranges


def _make_mlp_kernel(chunk, n_chunks):
    def mlp_kernel(x_ref, cols_ref, w2_ref, w3_ref, w4_ref, o_ref):
        # cols_ref packs the column params: [w1 | b1 | b2 | b3 | b4 | w5 | b5 | 0]
        w1c = cols_ref[:, 0:1]          # (H, 1) f32
        b1c = cols_ref[:, 1:2]
        b2c = cols_ref[:, 2:3]
        b3c = cols_ref[:, 3:4]
        b4c = cols_ref[:, 4:5]
        w5c = cols_ref[:, 5:6]
        b5s = cols_ref[0:1, 6:7]        # (1, 1) output-layer bias
        w2 = w2_ref[...]                # (H, H) bf16, W^T layout
        w3 = w3_ref[...]
        w4 = w4_ref[...]

        def body(c, carry):
            off = pl.multiple_of(c * chunk, chunk)
            x = x_ref[:, pl.ds(off, chunk)]                      # (1, chunk) batch-on-lanes

            # layer 1: in_features == 1 -> outer product on the VPU (off the MXU)
            h = jnp.maximum(w1c * x + b1c, 0.0)                  # (H, chunk) f32

            # layers 2-4: bf16 operands on the MXU, f32 accumulation; bias/ReLU in f32
            h = jnp.maximum(
                jnp.dot(w2, h.astype(jnp.bfloat16),
                        preferred_element_type=jnp.float32) + b2c, 0.0)
            h = jnp.maximum(
                jnp.dot(w3, h.astype(jnp.bfloat16),
                        preferred_element_type=jnp.float32) + b3c, 0.0)
            h = jnp.maximum(
                jnp.dot(w4, h.astype(jnp.bfloat16),
                        preferred_element_type=jnp.float32) + b4c, 0.0)

            # output layer: out_features == 1 -> weighted sum over (padded) features
            # (VPU multiply + XLU sublane reduce), kept off the MXU
            out = jnp.sum(w5c * h, axis=0, keepdims=True) + b5s  # (1, chunk)
            o_ref[:, pl.ds(off, chunk)] = out.astype(o_ref.dtype)
            return carry

        jax.lax.fori_loop(0, n_chunks, body, 0, unroll=False)

    return mlp_kernel


def regression_model_forward(x, params, *, batch_tile=4096):
    """x: (N, 1) float32. params: torch-layout dict of (in,out) weights, (1,out) biases."""
    N = x.shape[0]
    H = _H

    def round_up(a, m):
        return ((a + m - 1) // m) * m

    # ---- tile policy -------------------------------------------------------
    # Lane-dense, multiple-of-128 tiles; >= 2 grid steps once there are
    # >= 256 lanes of work (v7x dual-TensorCore sharding on the "parallel"
    # axis); capped at batch_tile (sweep 2048-8192 — VMEM is not the limiter).
    lanes = round_up(max(N, 1), 128)
    if lanes <= 256:
        tile = lanes
    else:
        tile = min(batch_tile, round_up(-(-lanes // 2), 128))
    n_pad = round_up(lanes, tile)
    grid = (n_pad // tile,)

    # In-kernel lane chunk bounds live vreg/VMEM ranges of the (H, chunk)
    # intermediates while the outer tile amortizes per-step overhead.
    chunk = math.gcd(tile, _LANE_CHUNK)
    n_chunks = tile // chunk

    # ---- parameter prep (done once, in the wrapper) ------------------------
    def pad_to(a, shape, dtype):
        out = jnp.zeros(shape, dtype)
        return out.at[: a.shape[0], : a.shape[1]].set(a.astype(dtype))

    # Pack the seven (.,1) column params into one (H, 8) f32 block:
    #   col 0: w1^T  col 1: b1  col 2: b2  col 3: b3  col 4: b4  col 5: w5  col 6: b5
    col_vals = [params["w1"].T, params["b1"].T, params["b2"].T, params["b3"].T,
                params["b4"].T, params["w5"], params["b5"].reshape(1, 1)]
    cols = jnp.zeros((H, 8), jnp.float32)
    for k, v in enumerate(col_vals):
        cols = cols.at[: v.shape[0], k].set(v[:, 0].astype(jnp.float32))

    # Hidden weights: transposed (kernel computes W^T @ h), padded 50->64, bf16.
    w2_t = pad_to(params["w2"].T, (H, H), jnp.bfloat16)
    w3_t = pad_to(params["w3"].T, (H, H), jnp.bfloat16)
    w4_t = pad_to(params["w4"].T, (H, H), jnp.bfloat16)

    # Batch on lanes: (N, 1) -> (1, n_pad), zero padded.
    x_t = jnp.zeros((1, n_pad), jnp.float32).at[0, :N].set(x[:, 0])

    weight_bytes = int(cols.size) * 4 + 3 * H * H * 2
    cost = pl.CostEstimate(
        flops=int(2 * (H + 3 * H * H + H) * n_pad),
        transcendentals=0,
        bytes_accessed=int(2 * 4 * n_pad + weight_bytes),
    )

    def const_spec(arr):
        # Constant index_map -> parameters stay resident across grid steps.
        return pl.BlockSpec(arr.shape, lambda i: (0, 0))

    out_t = pl.pallas_call(
        _make_mlp_kernel(chunk, n_chunks),
        out_shape=jax.ShapeDtypeStruct((1, n_pad), jnp.float32),
        grid_spec=pltpu.PrefetchScalarGridSpec(
            num_scalar_prefetch=0,
            grid=grid,
            in_specs=[
                pl.BlockSpec((1, tile), lambda i: (0, i)),   # x, batch-on-lanes
                const_spec(cols),
                const_spec(w2_t), const_spec(w3_t), const_spec(w4_t),
            ],
            out_specs=pl.BlockSpec((1, tile), lambda i: (0, i)),
        ),
        compiler_params=pltpu.CompilerParams(
            dimension_semantics=("parallel",)),
        cost_estimate=cost,
    )(x_t, cols, w2_t, w3_t, w4_t)

    # Back to the torch-style (N, 1) output.
    return out_t[0, :N].reshape(N, 1)


def init_params(key):
    """Deterministic init mimicking torch.nn.Linear default:
    U(-1/sqrt(fan_in), 1/sqrt(fan_in)) for both weights and biases."""
    dims = [(1, 50), (50, 50), (50, 50), (50, 50), (50, 1)]
    params = {}
    for idx, (fan_in, fan_out) in enumerate(dims, start=1):
        key, kw, kb = jax.random.split(key, 3)
        bound = 1.0 / (fan_in ** 0.5)
        params[f"w{idx}"] = jax.random.uniform(
            kw, (fan_in, fan_out), jnp.float32, -bound, bound)
        params[f"b{idx}"] = jax.random.uniform(
            kb, (1, fan_out), jnp.float32, -bound, bound)
    return params


def reference_forward(x, params):
    p = jax.lax.Precision.HIGHEST   # true-f32 reference matmuls
    h = x
    for idx in range(1, 5):
        h = jnp.maximum(
            jnp.dot(h, params[f"w{idx}"], precision=p) + params[f"b{idx}"], 0.0)
    return jnp.dot(h, params["w5"], precision=p) + params["b5"]


if __name__ == "__main__":
    key = jax.random.PRNGKey(0)
    kx, kp = jax.random.split(key)
    params = init_params(kp)

    # Primary small run: N=300 (non-multiple of 128) -> 2-step grid, 1 chunk/step.
    N = 300
    x = jax.random.uniform(kx, (N, 1), jnp.float32, -3.0, 3.0)
    out = jax.block_until_ready(regression_model_forward(x, params))
    ref = reference_forward(x, params)
    assert out.shape == (N, 1)
    # bf16 matmul operands (f32 accumulate) vs f32-HIGHEST reference -> ~1e-3 level error.
    assert jnp.allclose(out, ref, atol=2e-2, rtol=2e-2), (
        f"mismatch vs reference, max abs err {float(jnp.max(jnp.abs(out - ref)))}")

    # Secondary run exercises the multi-chunk fori_loop path (tile=1536, chunk=512).
    N2 = 3000
    x2 = jax.random.uniform(kx, (N2, 1), jnp.float32, -3.0, 3.0)
    out2 = jax.block_until_ready(regression_model_forward(x2, params))
    ref2 = reference_forward(x2, params)
    assert out2.shape == (N2, 1)
    assert jnp.allclose(out2, ref2, atol=2e-2, rtol=2e-2), (
        f"mismatch vs reference (chunked), max abs err {float(jnp.max(jnp.abs(out2 - ref2)))}")

    print("KERNEL_OK")
</pallas_src>

<mosaic_0001>
module attributes {stable_mosaic.version = 11 : i64} {
  func.func @mlp_kernel(%arg0: i32, %arg1: memref<1x256xf32, #tpu.memory_space<vmem>>, %arg2: memref<64x8xf32, #tpu.memory_space<vmem>>, %arg3: memref<64x64xbf16, #tpu.memory_space<vmem>>, %arg4: memref<64x64xbf16, #tpu.memory_space<vmem>>, %arg5: memref<64x64xbf16, #tpu.memory_space<vmem>>, %arg6: memref<1x256xf32, #tpu.memory_space<vmem>>) attributes {dimension_semantics = [#tpu.dimension_semantics<parallel>], iteration_bounds = array<i64: 2>, scalar_prefetch = 0 : i64, scratch_operands = 0 : i64, tpu.core_type = #tpu.core_type<tc>, window_params = [{transform_indices = @transform_0, window_bounds = array<i64: 1, 256>}, {pipeline_mode = #tpu.pipeline_mode<synchronous>, transform_indices = @transform_1, window_bounds = array<i64: 64, 8>}, {pipeline_mode = #tpu.pipeline_mode<synchronous>, transform_indices = @transform_2, window_bounds = array<i64: 64, 64>}, {pipeline_mode = #tpu.pipeline_mode<synchronous>, transform_indices = @transform_3, window_bounds = array<i64: 64, 64>}, {pipeline_mode = #tpu.pipeline_mode<synchronous>, transform_indices = @transform_4, window_bounds = array<i64: 64, 64>}, {transform_indices = @transform_5, window_bounds = array<i64: 1, 256>}]} {
    %c0 = arith.constant 0 : index
    %c0_0 = arith.constant 0 : index
    %0 = vector.load %arg2[%c0, %c0_0] : memref<64x8xf32, #tpu.memory_space<vmem>>, vector<64x1xf32>
    %c0_1 = arith.constant 0 : index
    %c1 = arith.constant 1 : index
    %1 = vector.load %arg2[%c0_1, %c1] : memref<64x8xf32, #tpu.memory_space<vmem>>, vector<64x1xf32>
    %c0_2 = arith.constant 0 : index
    %c2 = arith.constant 2 : index
    %2 = vector.load %arg2[%c0_2, %c2] : memref<64x8xf32, #tpu.memory_space<vmem>>, vector<64x1xf32>
    %c0_3 = arith.constant 0 : index
    %c3 = arith.constant 3 : index
    %3 = vector.load %arg2[%c0_3, %c3] : memref<64x8xf32, #tpu.memory_space<vmem>>, vector<64x1xf32>
    %c0_4 = arith.constant 0 : index
    %c4 = arith.constant 4 : index
    %4 = vector.load %arg2[%c0_4, %c4] : memref<64x8xf32, #tpu.memory_space<vmem>>, vector<64x1xf32>
    %c0_5 = arith.constant 0 : index
    %c5 = arith.constant 5 : index
    %5 = vector.load %arg2[%c0_5, %c5] : memref<64x8xf32, #tpu.memory_space<vmem>>, vector<64x1xf32>
    %c0_6 = arith.constant 0 : index
    %c6 = arith.constant 6 : index
    %6 = vector.load %arg2[%c0_6, %c6] : memref<64x8xf32, #tpu.memory_space<vmem>>, vector<1x1xf32>
    %c0_7 = arith.constant 0 : index
    %c0_8 = arith.constant 0 : index
    %7 = vector.load %arg3[%c0_7, %c0_8] : memref<64x64xbf16, #tpu.memory_space<vmem>>, vector<64x64xbf16>
    %c0_9 = arith.constant 0 : index
    %c0_10 = arith.constant 0 : index
    %8 = vector.load %arg4[%c0_9, %c0_10] : memref<64x64xbf16, #tpu.memory_space<vmem>>, vector<64x64xbf16>
    %c0_11 = arith.constant 0 : index
    %c0_12 = arith.constant 0 : index
    %9 = vector.load %arg5[%c0_11, %c0_12] : memref<64x64xbf16, #tpu.memory_space<vmem>>, vector<64x64xbf16>
    %c0_i32 = arith.constant 0 : i32
    %c256_i32 = arith.constant 256 : i32
    %10 = arith.muli %c0_i32, %c256_i32 : i32
    %11 = tpu.assume_multiple %10, 256 : i32
    %c0_13 = arith.constant 0 : index
    %12 = arith.index_cast %11 : i32 to index
    %13 = vector.load %arg1[%c0_13, %12] : memref<1x256xf32, #tpu.memory_space<vmem>>, vector<1x256xf32>
    %14 = vector.broadcast %0 : vector<64x1xf32> to vector<64x256xf32>
    %15 = vector.broadcast %13 : vector<1x256xf32> to vector<64x256xf32>
    %16 = arith.mulf %14, %15 : vector<64x256xf32>
    %17 = vector.broadcast %1 : vector<64x1xf32> to vector<64x256xf32>
    %18 = arith.addf %16, %17 : vector<64x256xf32>
    %cst = arith.constant 0.000000e+00 : f32
    %19 = vector.broadcast %cst : f32 to vector<64x256xf32>
    %20 = arith.maximumf %18, %19 : vector<64x256xf32>
    %21 = arith.truncf %20 : vector<64x256xf32> to vector<64x256xbf16>
    %cst_14 = arith.constant dense<0.000000e+00> : vector<64x256xf32>
    %22 = tpu.matmul %7, %21, %cst_14 {dimension_numbers = #tpu.dot_dimension_numbers<[1], [0], [0], [1], [0, 0, 1, 1], [], []>} : vector<64x64xbf16>, vector<64x256xbf16>, vector<64x256xf32> -> vector<64x256xf32>
    %23 = vector.broadcast %2 : vector<64x1xf32> to vector<64x256xf32>
    %24 = arith.addf %22, %23 : vector<64x256xf32>
    %cst_15 = arith.constant 0.000000e+00 : f32
    %25 = vector.broadcast %cst_15 : f32 to vector<64x256xf32>
    %26 = arith.maximumf %24, %25 : vector<64x256xf32>
    %27 = arith.truncf %26 : vector<64x256xf32> to vector<64x256xbf16>
    %cst_16 = arith.constant dense<0.000000e+00> : vector<64x256xf32>
    %28 = tpu.matmul %8, %27, %cst_16 {dimension_numbers = #tpu.dot_dimension_numbers<[1], [0], [0], [1], [0, 0, 1, 1], [], []>} : vector<64x64xbf16>, vector<64x256xbf16>, vector<64x256xf32> -> vector<64x256xf32>
    %29 = vector.broadcast %3 : vector<64x1xf32> to vector<64x256xf32>
    %30 = arith.addf %28, %29 : vector<64x256xf32>
    %cst_17 = arith.constant 0.000000e+00 : f32
    %31 = vector.broadcast %cst_17 : f32 to vector<64x256xf32>
    %32 = arith.maximumf %30, %31 : vector<64x256xf32>
    %33 = arith.truncf %32 : vector<64x256xf32> to vector<64x256xbf16>
    %cst_18 = arith.constant dense<0.000000e+00> : vector<64x256xf32>
    %34 = tpu.matmul %9, %33, %cst_18 {dimension_numbers = #tpu.dot_dimension_numbers<[1], [0], [0], [1], [0, 0, 1, 1], [], []>} : vector<64x64xbf16>, vector<64x256xbf16>, vector<64x256xf32> -> vector<64x256xf32>
    %35 = vector.broadcast %4 : vector<64x1xf32> to vector<64x256xf32>
    %36 = arith.addf %34, %35 : vector<64x256xf32>
    %cst_19 = arith.constant 0.000000e+00 : f32
    %37 = vector.broadcast %cst_19 : f32 to vector<64x256xf32>
    %38 = arith.maximumf %36, %37 : vector<64x256xf32>
    %39 = vector.broadcast %5 : vector<64x1xf32> to vector<64x256xf32>
    %40 = arith.mulf %39, %38 : vector<64x256xf32>
    %cst_20 = arith.constant dense<0.000000e+00> : vector<256xf32>
    %41 = vector.multi_reduction <add>, %40, %cst_20 [0] : vector<64x256xf32> to vector<256xf32>
    %42 = vector.shape_cast %41 : vector<256xf32> to vector<1x256xf32>
    %43 = vector.broadcast %6 : vector<1x1xf32> to vector<1x256xf32>
    %44 = arith.addf %42, %43 : vector<1x256xf32>
    %c0_21 = arith.constant 0 : index
    %45 = arith.index_cast %11 : i32 to index
    %46 = vector.load %arg6[%c0_21, %45] : memref<1x256xf32, #tpu.memory_space<vmem>>, vector<1x256xf32>
    tpu.vector_store %arg6[%c0_21, %45], %44 {strides = array<i32>} : memref<1x256xf32, #tpu.memory_space<vmem>>, vector<1x256xf32>,
    %c1_i32 = arith.constant 1 : i32
    return
  }
  func.func @transform_0(%arg0: i32) -> (i32, i32) {
    %c0_i32 = arith.constant 0 : i32
    %c0_i32_0 = arith.constant 0 : i32
    return %c0_i32, %arg0 : i32, i32
  }
  func.func @transform_1(%arg0: i32) -> (i32, i32) {
    %c0_i32 = arith.constant 0 : i32
    %c0_i32_0 = arith.constant 0 : i32
    %c0_i32_1 = arith.constant 0 : i32
    return %c0_i32, %c0_i32_0 : i32, i32
  }
  func.func @transform_2(%arg0: i32) -> (i32, i32) {
    %c0_i32 = arith.constant 0 : i32
    %c0_i32_0 = arith.constant 0 : i32
    %c0_i32_1 = arith.constant 0 : i32
    return %c0_i32, %c0_i32_0 : i32, i32
  }
  func.func @transform_3(%arg0: i32) -> (i32, i32) {
    %c0_i32 = arith.constant 0 : i32
    %c0_i32_0 = arith.constant 0 : i32
    %c0_i32_1 = arith.constant 0 : i32
    return %c0_i32, %c0_i32_0 : i32, i32
  }
  func.func @transform_4(%arg0: i32) -> (i32, i32) {
    %c0_i32 = arith.constant 0 : i32
    %c0_i32_0 = arith.constant 0 : i32
    %c0_i32_1 = arith.constant 0 : i32
    return %c0_i32, %c0_i32_0 : i32, i32
  }
  func.func @transform_5(%arg0: i32) -> (i32, i32) {
    %c0_i32 = arith.constant 0 : i32
    %c0_i32_0 = arith.constant 0 : i32
    return %c0_i32, %arg0 : i32, i32
  }
}

</mosaic_0001>

<llo_original>
// kernel: tpu_custom_call.1
$region0: #{tpu_custom_call.1}
  #allocation0 [shape = 'u32[]', space=smem, size = 0x4, offset = 0x4, fixed_abs, tag = 'smem constant byte address 0x4 - core index']
  #allocation1 [shape = 'u32[144,128]{1,0:T(1,128)}', space=vmem, size = 0x12000, scoped, tag = 'internal scratch']
  %s0 = inlined_call_operand.vmem [shape: f32[1,512], index: 0, kind: input, shape index: {}]
  %s1 = inlined_call_operand.vmem [shape: f32[64,8], index: 1, kind: input, shape index: {}]
  %s2 = inlined_call_operand.vmem [shape: bf16[64,64], index: 2, kind: input, shape index: {}]
  %s3 = inlined_call_operand.vmem [shape: bf16[64,64], index: 3, kind: input, shape index: {}]
  %s4 = inlined_call_operand.hbm [shape: bf16[64,64], index: 4, kind: input, shape index: {}]
  %s5 = inlined_call_operand.hbm [shape: f32[1,512], index: 5, kind: output, shape index: {}]
  %s6 = sld [smem:[#allocation0]]
  $region57: #{tpu_custom_call.1} parent=0
    _
  %s8 = ssub.s32 1, %s6
  %s9 = scalar_select 0, %s8, %s6
  $region1: #{tpu_custom_call.1} parent=0
    #allocation2 [shape = 'u8[16384]{0}', space=vmem, size = 0x4000, scoped, tag = 'input window, operand 4, single buffered']
    #allocation3 [shape = 's32[2]{0}', space=sflag, size = 0x8, scoped, tag = 'scoped memory for tpu_custom_call.1']
    #allocation4 [shape = 's32[2]{0}', space=sflag, size = 0x8, scoped, tag = 'scoped memory for tpu_custom_call.1']
    #allocation5 [shape = 'u8[2048]{0}', space=vmem, size = 0x800, scoped, tag = 'output window, operand 0']
    %10 = vsyncpa [#allocation3], 0
    %11 = vsyncpa [#allocation4], 0
    %s12 = scalar_lea.sflag [#allocation4], 1
    %13 = vsyncpa %s12, 0
    loop: start=0, step=1, limit=4
    $region2: #{tpu_custom_call.1} parent=1 // loop_pre_header
      _
    $region3: #{tpu_custom_call.1} parent=1 // loop_header
      %s15 = sphi 0, %s19
      %p16 = scmp.ge.s32.totalorder %s15, 4
      %s25 = sphi 0, %s27
      %s28 = sphi 0, %s25
      %s29 = sphi 0, %s28
      %s45 = sphi 0, %s29
      %s49 = sphi 0, %s49
      %s51 = sphi 0, %s49
      %s52 = sphi 0, %s51
      %s66 = sphi 0, %s52
      %s70 = sphi 0, %s70
      %s72 = sphi 0, %s70
      %s73 = sphi 0, %s72
      %s87 = sphi 0, %s73
      %s91 = sphi 0, %s91
      %s93 = sphi 0, %s91
      %s94 = sphi 0, %s93
      %s108 = sphi 0, %s94
      %s112 = sphi 0, %s112
      %s114 = sphi 0, %s112
      %s115 = sphi 0, %s114
      %s129 = sphi 0, %s115
      %s135 = sphi 0, %s137
      %s138 = sphi 0, %s135
      %s139 = sphi 0, %s138
      %s155 = sphi 0, %s139
    $region4: #{tpu_custom_call.1} parent=1 // loop_header_branch
      %18 = sbr.rel (%p16) target = $region8
    $region5: #{tpu_custom_call.1} parent=1 // loop_body
      %s20 = ssub.s32 %s15, 1
      %s21 = ssub.s32 %s15, 2
      %s22 = sadd.s32 %s15, 1
      %s23 = ssub.s32 %s15, %s22
      %p24 = scmp.eq.s32.totalorder %s23, 0
      %s26 = sadd.s32 %s25, 1
      %s27 = scalar_select %p24, %s25, %s26
      %p30 = pneg %p24
      %p31 = scmp.eq.s32.totalorder %s15, 1
      %p32 = por %p30, %p31
      %p33 = scmp.ne.s32.totalorder %s25, %s28
      %p34 = scmp.eq.s32.totalorder %s15, 0
      %p35 = por %p33, %p34
      %p36 = scmp.ne.s32.totalorder %s25, %s28
      %p37 = scmp.eq.s32.totalorder %s20, 1
      %p38 = por %p36, %p37
      %p39 = scmp.ne.s32.totalorder %s28, %s29
      %p40 = scmp.eq.s32.totalorder %s20, 0
      %p41 = por %p39, %p40
      %p42 = scmp.ne.s32.totalorder %s28, %s29
      %p43 = scmp.eq.s32.totalorder %s21, 1
      %p44 = por %p42, %p43
      %p46 = scmp.ne.s32.totalorder %s29, %s45
      %p47 = scmp.eq.s32.totalorder %s21, 0
      %p48 = por %p46, %p47
      %s50 = sadd.s32 %s49, 1
      %p53 = scmp.eq.s32.totalorder %s15, 1
      %p54 = scmp.ne.s32.totalorder %s49, %s51
      %p55 = scmp.eq.s32.totalorder %s15, 0
      %p56 = por %p54, %p55
      %p57 = scmp.ne.s32.totalorder %s49, %s51
      %p58 = scmp.eq.s32.totalorder %s20, 1
      %p59 = por %p57, %p58
      %p60 = scmp.ne.s32.totalorder %s51, %s52
      %p61 = scmp.eq.s32.totalorder %s20, 0
      %p62 = por %p60, %p61
      %p63 = scmp.ne.s32.totalorder %s51, %s52
      %p64 = scmp.eq.s32.totalorder %s21, 1
      %p65 = por %p63, %p64
      %p67 = scmp.ne.s32.totalorder %s52, %s66
      %p68 = scmp.eq.s32.totalorder %s21, 0
      %p69 = por %p67, %p68
      %s71 = sadd.s32 %s70, 1
      %p74 = scmp.eq.s32.totalorder %s15, 1
      %p75 = scmp.ne.s32.totalorder %s70, %s72
      %p76 = scmp.eq.s32.totalorder %s15, 0
      %p77 = por %p75, %p76
      %p78 = scmp.ne.s32.totalorder %s70, %s72
      %p79 = scmp.eq.s32.totalorder %s20, 1
      %p80 = por %p78, %p79
      %p81 = scmp.ne.s32.totalorder %s72, %s73
      %p82 = scmp.eq.s32.totalorder %s20, 0
      %p83 = por %p81, %p82
      %p84 = scmp.ne.s32.totalorder %s72, %s73
      %p85 = scmp.eq.s32.totalorder %s21, 1
      %p86 = por %p84, %p85
      %p88 = scmp.ne.s32.totalorder %s73, %s87
      %p89 = scmp.eq.s32.totalorder %s21, 0
      %p90 = por %p88, %p89
      %s92 = sadd.s32 %s91, 1
      %p95 = scmp.eq.s32.totalorder %s15, 1
      %p96 = scmp.ne.s32.totalorder %s91, %s93
      %p97 = scmp.eq.s32.totalorder %s15, 0
      %p98 = por %p96, %p97
      %p99 = scmp.ne.s32.totalorder %s91, %s93
      %p100 = scmp.eq.s32.totalorder %s20, 1
      %p101 = por %p99, %p100
      %p102 = scmp.ne.s32.totalorder %s93, %s94
      %p103 = scmp.eq.s32.totalorder %s20, 0
      %p104 = por %p102, %p103
      %p105 = scmp.ne.s32.totalorder %s93, %s94
      %p106 = scmp.eq.s32.totalorder %s21, 1
      %p107 = por %p105, %p106
      %p109 = scmp.ne.s32.totalorder %s94, %s108
      %p110 = scmp.eq.s32.totalorder %s21, 0
      %p111 = por %p109, %p110
      %s113 = sadd.s32 %s112, 1
      %p116 = scmp.eq.s32.totalorder %s15, 1
      %p117 = scmp.ne.s32.totalorder %s112, %s114
      %p118 = scmp.eq.s32.totalorder %s15, 0
      %p119 = por %p117, %p118
      %p120 = scmp.ne.s32.totalorder %s112, %s114
      %p121 = scmp.eq.s32.totalorder %s20, 1
      %p122 = por %p120, %p121
      %p123 = scmp.ne.s32.totalorder %s114, %s115
      %p124 = scmp.eq.s32.totalorder %s20, 0
      %p125 = por %p123, %p124
      %p126 = scmp.ne.s32.totalorder %s114, %s115
      %p127 = scmp.eq.s32.totalorder %s21, 1
      %p128 = por %p126, %p127
      %p130 = scmp.ne.s32.totalorder %s115, %s129
      %p131 = scmp.eq.s32.totalorder %s21, 0
      %p132 = por %p130, %p131
      %s133 = ssub.s32 %s15, %s22
      %p134 = scmp.eq.s32.totalorder %s133, 0
      %s136 = sadd.s32 %s135, 1
      %s137 = scalar_select %p134, %s135, %s136
      %p140 = pneg %p134
      %p141 = scmp.eq.s32.totalorder %s15, 1
      %p142 = por %p140, %p141
      %p143 = scmp.ne.s32.totalorder %s135, %s138
      %p144 = scmp.eq.s32.totalorder %s15, 0
      %p145 = por %p143, %p144
      %p146 = scmp.ne.s32.totalorder %s135, %s138
      %p147 = scmp.eq.s32.totalorder %s20, 1
      %p148 = por %p146, %p147
      %p149 = scmp.ne.s32.totalorder %s138, %s139
      %p150 = scmp.eq.s32.totalorder %s20, 0
      %p151 = por %p149, %p150
      %p152 = scmp.ne.s32.totalorder %s138, %s139
      %p153 = scmp.eq.s32.totalorder %s21, 1
      %p154 = por %p152, %p153
      %p156 = scmp.ne.s32.totalorder %s139, %s155
      %p157 = scmp.eq.s32.totalorder %s21, 0
      %p158 = por %p156, %p157
      %p159 = scmp.le.s32.totalorder 1, %s15
      %p160 = scmp.lt.s32.totalorder %s15, 3
      %p161 = pnand %p159, %p160
      %p162 = pneg %p161
      // Predicated region
      $region9: #{tpu_custom_call.1} parent=5 // pred_check
        _
      $region10: #{tpu_custom_call.1} parent=5 // pred_check_branch
        %164 = sbr.rel (%p161) target = $region12
      $region11: #{tpu_custom_call.1} parent=5 // pred_region
        %s165 = ssub.s32 %s15, 1
        // Predicated region
        $region13: #{tpu_custom_call.1} parent=11 // pred_check
          %p166 = pneg %p62
        $region14: #{tpu_custom_call.1} parent=11 // pred_check_branch
          %168 = sbr.rel (%p166) target = $region16
        $region15: #{tpu_custom_call.1} parent=11 // pred_region
          _
        $region16: #{tpu_custom_call.1} parent=11 // pred_fallthru
          _
        // Predicated region
        $region17: #{tpu_custom_call.1} parent=11 // pred_check
          %p169 = pneg %p83
        $region18: #{tpu_custom_call.1} parent=11 // pred_check_branch
          %171 = sbr.rel (%p169) target = $region20
        $region19: #{tpu_custom_call.1} parent=11 // pred_region
          _
        $region20: #{tpu_custom_call.1} parent=11 // pred_fallthru
          _
        // Predicated region
        $region21: #{tpu_custom_call.1} parent=11 // pred_check
          %p172 = pneg %p104
        $region22: #{tpu_custom_call.1} parent=11 // pred_check_branch
          %174 = sbr.rel (%p172) target = $region24
        $region23: #{tpu_custom_call.1} parent=11 // pred_region
          _
        $region24: #{tpu_custom_call.1} parent=11 // pred_fallthru
          _
        // Predicated region
        $region25: #{tpu_custom_call.1} parent=11 // pred_check
          %p175 = pneg %p125
        $region26: #{tpu_custom_call.1} parent=11 // pred_check_branch
          %177 = sbr.rel (%p175) target = $region28
        $region27: #{tpu_custom_call.1} parent=11 // pred_region
          %s179 = ssub.s32 512, 512
          %180 = vsyncadd [#allocation3], %s179
          %s181 = sshll.u32 [#allocation2], 4
          %s182 = int_to_ptr.vmem [resolvable:$true] %s181
          %187 = dma.hbm_to_vmem [thread:$0]  %s4, 512, %s182, [#allocation3], 64, 64, 4
        $region28: #{tpu_custom_call.1} parent=11 // pred_fallthru
          _
      $region12: #{tpu_custom_call.1} parent=5 // pred_fallthru
        _
      %p188 = scmp.lt.s32.totalorder %s15, 2
      // Predicated region
      $region29: #{tpu_custom_call.1} parent=5 // pred_check
        %p189 = pneg %p188
      $region30: #{tpu_custom_call.1} parent=5 // pred_check_branch
        %191 = sbr.rel (%p189) target = $region32
      $region31: #{tpu_custom_call.1} parent=5 // pred_region
        // Predicated region
        $region33: #{tpu_custom_call.1} parent=31 // pred_check
          %p192 = pneg %p35
        $region34: #{tpu_custom_call.1} parent=31 // pred_check_branch
          %194 = sbr.rel (%p192) target = $region36
        $region35: #{tpu_custom_call.1} parent=31 // pred_region
          %s195 = smul.u32 2, %s15
          %p196 = scmp.lt.s32.totalorder %s195, 3
          %s197 = scalar_select %p196, %s195, 3
          %s198 = scalar_lea.vmem %s0, %s197
          %s199 = smul.u32 2, %s15
        $region36: #{tpu_custom_call.1} parent=31 // pred_fallthru
          _
      $region32: #{tpu_custom_call.1} parent=5 // pred_fallthru
        _
      %p200 = scmp.le.s32.totalorder 1, %s15
      %p201 = scmp.lt.s32.totalorder %s15, 3
      %p202 = pnand %p200, %p201
      %p203 = pneg %p202
      // Predicated region
      $region37: #{tpu_custom_call.1} parent=5 // pred_check
        _
      $region38: #{tpu_custom_call.1} parent=5 // pred_check_branch
        %205 = sbr.rel (%p202) target = $region40
      $region39: #{tpu_custom_call.1} parent=5 // pred_region
        %s206 = ssub.s32 %s15, 1
        // Predicated region
        $region41: #{tpu_custom_call.1} parent=39 // pred_check
          %p207 = pneg %p125
        $region42: #{tpu_custom_call.1} parent=39 // pred_check_branch
          %209 = sbr.rel (%p207) target = $region44
        $region43: #{tpu_custom_call.1} parent=39 // pred_region
          %210 = dma.done [#allocation3], 512
        $region44: #{tpu_custom_call.1} parent=39 // pred_fallthru
          _
        %s211 = smul.u32 2, %s20
        %p212 = scmp.lt.s32.totalorder %s211, 3
        %s213 = scalar_select %p212, %s211, 3
        %s214 = scalar_lea.vmem %s0, %s213
        %p215 = pneg %p41
        %p216 = pneg %p38
        %p217 = pneg %p62
        %p218 = pneg %p59
        %p219 = pneg %p83
        %p220 = pneg %p80
        %p221 = pneg %p104
        %p222 = pneg %p101
        %p223 = pneg %p125
        %p224 = pneg %p122
        %p225 = pneg %p151
        %p226 = pneg %p148
        %s227 = sand.u32 %s138, 1
        %s228 = scalar_lea.sflag [#allocation4], %s227
        %s229 = sand.u32 %s138, 1
        %s230 = smul.addr %s229, 2
        %s231 = scalar_lea.vmem [#allocation5], %s230
        %s232 = smul.u32 2, %s20
        %p233 = scmp.lt.s32.totalorder %s232, 3
        %s234 = scalar_select %p233, %s232, 3
        %s235 = scalar_lea.vmem %s0, %s234
        %s236 = smul.u32 2, %s20
        %s237 = smul.u32 2, %s20
        %v239 = vld [vmem:[%s1] sm:$0xff]
        %v240 = vld [vmem:[%s1 + $0x8] sm:$0xff]
        %v241 = vld [vmem:[%s1 + $0x10] sm:$0xff]
        %v242 = vld [vmem:[%s1 + $0x18] sm:$0xff]
        %v243 = vld [vmem:[%s1 + $0x20] sm:$0xff]
        %v244 = vld [vmem:[%s1 + $0x28] sm:$0xff]
        %v245 = vld [vmem:[%s1 + $0x30] sm:$0xff]
        %v246 = vld [vmem:[%s1 + $0x38] sm:$0xff]
        %v247 = vld [vmem:[%s1] sm:$0x1]
        %v248 = vld [vmem:[%s2] sm:$0xf]
        %v249 = vld [vmem:[%s2 + $0x4] sm:$0xf]
        %v250 = vld [vmem:[%s2 + $0x8] sm:$0xf]
        %v251 = vld [vmem:[%s2 + $0xc] sm:$0xf]
        %v252 = vld [vmem:[%s2 + $0x10] sm:$0xf]
        %v253 = vld [vmem:[%s2 + $0x14] sm:$0xf]
        %v254 = vld [vmem:[%s2 + $0x18] sm:$0xf]
        %v255 = vld [vmem:[%s2 + $0x1c] sm:$0xf]
        %v256 = vld [vmem:[%s3] sm:$0xf]
        %v257 = vld [vmem:[%s3 + $0x4] sm:$0xf]
        %v258 = vld [vmem:[%s3 + $0x8] sm:$0xf]
        %v259 = vld [vmem:[%s3 + $0xc] sm:$0xf]
        %v260 = vld [vmem:[%s3 + $0x10] sm:$0xf]
        %v261 = vld [vmem:[%s3 + $0x14] sm:$0xf]
        %v262 = vld [vmem:[%s3 + $0x18] sm:$0xf]
        %v263 = vld [vmem:[%s3 + $0x1c] sm:$0xf]
        %v264 = vld [vmem:[#allocation2] sm:$0xf]
        %v265 = vld [vmem:[#allocation2 + $0x4] sm:$0xf]
        %v266 = vld [vmem:[#allocation2 + $0x8] sm:$0xf]
        %v267 = vld [vmem:[#allocation2 + $0xc] sm:$0xf]
        %v268 = vld [vmem:[#allocation2 + $0x10] sm:$0xf]
        %v269 = vld [vmem:[#allocation2 + $0x14] sm:$0xf]
        %v270 = vld [vmem:[#allocation2 + $0x18] sm:$0xf]
        %v271 = vld [vmem:[#allocation2 + $0x1c] sm:$0xf]
        %v272 = vld [vmem:[%s235] sm:$0x3]
        %274 = vset.pattern.permute.xlu0 0
        %275 = vperm.xlu0 %274, %v239
        %v276 = vpop.permute.xlu0 %275
        %279 = vset.pattern.permute.xlu0 0
        %280 = vperm.xlu0 %279, %v240
        %v281 = vpop.permute.xlu0 %280
        %284 = vset.pattern.permute.xlu0 0
        %285 = vperm.xlu0 %284, %v241
        %v286 = vpop.permute.xlu0 %285
        %289 = vset.pattern.permute.xlu0 0
        %290 = vperm.xlu0 %289, %v242
        %v291 = vpop.permute.xlu0 %290
        %294 = vset.pattern.permute.xlu0 0
        %295 = vperm.xlu0 %294, %v243
        %v296 = vpop.permute.xlu0 %295
        %299 = vset.pattern.permute.xlu0 0
        %300 = vperm.xlu0 %299, %v244
        %v301 = vpop.permute.xlu0 %300
        %304 = vset.pattern.permute.xlu0 0
        %305 = vperm.xlu0 %304, %v245
        %v306 = vpop.permute.xlu0 %305
        %309 = vset.pattern.permute.xlu0 0
        %310 = vperm.xlu0 %309, %v246
        %v311 = vpop.permute.xlu0 %310
        %v314 = vlaneseq
        %v315 = vshrl.u32 %v314, 7
        %v316 = vsub.s32 0, %v315
        %v317 = vrot.slane %v272, %v316
        %v318 = vlaneseq
        %v319 = vshrl.u32 %v318, 7
        %v320 = vsub.s32 1, %v319
        %v321 = vrot.slane %v272, %v320
        %v324 = vmul.f32 %v276, %v317
        %v325 = vmul.f32 %v276, %v321
        %v326 = vmul.f32 %v281, %v317
        %v327 = vmul.f32 %v281, %v321
        %v328 = vmul.f32 %v286, %v317
        %v329 = vmul.f32 %v286, %v321
        %v330 = vmul.f32 %v291, %v317
        %v331 = vmul.f32 %v291, %v321
        %v332 = vmul.f32 %v296, %v317
        %v333 = vmul.f32 %v296, %v321
        %v334 = vmul.f32 %v301, %v317
        %v335 = vmul.f32 %v301, %v321
        %v336 = vmul.f32 %v306, %v317
        %v337 = vmul.f32 %v306, %v321
        %v338 = vmul.f32 %v311, %v317
        %v339 = vmul.f32 %v311, %v321
        %340 = vset.pattern.permute.xlu0 1
        %341 = vperm.xlu0 %340, %v239
        %v342 = vpop.permute.xlu0 %341
        %344 = vset.pattern.permute.xlu0 1
        %345 = vperm.xlu0 %344, %v240
        %v346 = vpop.permute.xlu0 %345
        %348 = vset.pattern.permute.xlu0 1
        %349 = vperm.xlu0 %348, %v241
        %v350 = vpop.permute.xlu0 %349
        %352 = vset.pattern.permute.xlu0 1
        %353 = vperm.xlu0 %352, %v242
        %v354 = vpop.permute.xlu0 %353
        %356 = vset.pattern.permute.xlu0 1
        %357 = vperm.xlu0 %356, %v243
        %v358 = vpop.permute.xlu0 %357
        %360 = vset.pattern.permute.xlu0 1
        %361 = vperm.xlu0 %360, %v244
        %v362 = vpop.permute.xlu0 %361
        %364 = vset.pattern.permute.xlu0 1
        %365 = vperm.xlu0 %364, %v245
        %v366 = vpop.permute.xlu0 %365
        %368 = vset.pattern.permute.xlu0 1
        %369 = vperm.xlu0 %368, %v246
        %v370 = vpop.permute.xlu0 %369
        %v372 = vadd.f32 %v324, %v342
        %v373 = vadd.f32 %v325, %v342
        %v374 = vadd.f32 %v326, %v346
        %v375 = vadd.f32 %v327, %v346
        %v376 = vadd.f32 %v328, %v350
        %v377 = vadd.f32 %v329, %v350
        %v378 = vadd.f32 %v330, %v354
        %v379 = vadd.f32 %v331, %v354
        %v380 = vadd.f32 %v332, %v358
        %v381 = vadd.f32 %v333, %v358
        %v382 = vadd.f32 %v334, %v362
        %v383 = vadd.f32 %v335, %v362
        %v384 = vadd.f32 %v336, %v366
        %v385 = vadd.f32 %v337, %v366
        %v386 = vadd.f32 %v338, %v370
        %v387 = vadd.f32 %v339, %v370
        %v388 = vmax.f32 %v372, 0.0
        %v389 = vmax.f32 %v373, 0.0
        %v390 = vmax.f32 %v374, 0.0
        %v391 = vmax.f32 %v375, 0.0
        %v392 = vmax.f32 %v376, 0.0
        %v393 = vmax.f32 %v377, 0.0
        %v394 = vmax.f32 %v378, 0.0
        %v395 = vmax.f32 %v379, 0.0
        %v396 = vmax.f32 %v380, 0.0
        %v397 = vmax.f32 %v381, 0.0
        %v398 = vmax.f32 %v382, 0.0
        %v399 = vmax.f32 %v383, 0.0
        %v400 = vmax.f32 %v384, 0.0
        %v401 = vmax.f32 %v385, 0.0
        %v402 = vmax.f32 %v386, 0.0
        %v403 = vmax.f32 %v387, 0.0
        %v404 = vpack.c.bf16 %v390, %v388
        %v405 = vpack.c.bf16 %v391, %v389
        %v406 = vpack.c.bf16 %v394, %v392
        %v407 = vpack.c.bf16 %v395, %v393
        %v408 = vpack.c.bf16 %v398, %v396
        %v409 = vpack.c.bf16 %v399, %v397
        %v410 = vpack.c.bf16 %v402, %v400
        %v411 = vpack.c.bf16 %v403, %v401
        %412 = vset.pattern.permute.xlu0 2
        %413 = vperm.xlu0 %412, %v239
        %v414 = vpop.permute.xlu0 %413
        %416 = vset.pattern.permute.xlu0 2
        %417 = vperm.xlu0 %416, %v240
        %v418 = vpop.permute.xlu0 %417
        %420 = vset.pattern.permute.xlu0 2
        %421 = vperm.xlu0 %420, %v241
        %v422 = vpop.permute.xlu0 %421
        %424 = vset.pattern.permute.xlu0 2
        %425 = vperm.xlu0 %424, %v242
        %v426 = vpop.permute.xlu0 %425
        %428 = vset.pattern.permute.xlu0 2
        %429 = vperm.xlu0 %428, %v243
        %v430 = vpop.permute.xlu0 %429
        %432 = vset.pattern.permute.xlu0 2
        %433 = vperm.xlu0 %432, %v244
        %v434 = vpop.permute.xlu0 %433
        %436 = vset.pattern.permute.xlu0 2
        %437 = vperm.xlu0 %436, %v245
        %v438 = vpop.permute.xlu0 %437
        %440 = vset.pattern.permute.xlu0 2
        %441 = vperm.xlu0 %440, %v246
        %v442 = vpop.permute.xlu0 %441
        %v452 = vunpack.c.l.b16 %v248
        %v453 = vunpack.c.l.b16 %v249
        %v454 = vunpack.c.l.b16 %v250
        %v455 = vunpack.c.l.b16 %v251
        %v456 = vunpack.c.l.b16 %v252
        %v457 = vunpack.c.l.b16 %v253
        %v458 = vunpack.c.l.b16 %v254
        %v459 = vunpack.c.l.b16 %v255
        %v460 = vpack.c.b16 %v453, %v452
        %v461 = vpack.c.b16 %v455, %v454
        %v462 = vpack.c.b16 %v457, %v456
        %v463 = vpack.c.b16 %v459, %v458
        %vm464 = vcmask 523264
        %v466 = vsel %vm464, %v460, 0
        %v469 = vsel %vm464, %v461, 0
        %v472 = vsel %vm464, %v462, 0
        %v475 = vsel %vm464, %v463, 0
        %477 = vmatprep.subr.bf16.mxu0 %v405
        %478 = vmatpush1.bf16.msra.mxu0 %v404
        %479 = vmatprep.subr.bf16.mxu0 %v407
        %480 = vmatpush1.bf16.msra.mxu0 %v406
        %481 = vmatprep.subr.bf16.mxu0 %v409
        %482 = vmatpush1.bf16.msra.mxu0 %v408
        %483 = vmatprep.subr.bf16.mxu0 %v411
        %484 = vmatpush1.bf16.msra.mxu0 %v410
        %485 = vmatprep.subr.bf16.mxu0 0
        %486 = vmatpush1.bf16.msra.mxu0 0
        %487 = vmatprep.subr.bf16.mxu0 0
        %488 = vmatpush1.bf16.msra.mxu0 0
        %489 = vmatprep.subr.bf16.mxu0 0
        %490 = vmatpush1.bf16.msra.mxu0 0
        %491 = vmatprep.subr.bf16.mxu0 0
        %492 = vmatpush1.bf16.msra.mxu0 0
        %493 = vmatprep.subr.bf16.mxu0 0
        %494 = vmatpush1.bf16.msra.mxu0 0
        %495 = vmatprep.subr.bf16.mxu0 0
        %496 = vmatpush1.bf16.msra.mxu0 0
        %497 = vmatprep.subr.bf16.mxu0 0
        %498 = vmatpush1.bf16.msra.mxu0 0
        %499 = vmatprep.subr.bf16.mxu0 0
        %500 = vmatpush1.bf16.msra.mxu0 0
        %501 = vmatprep.subr.bf16.mxu0 0
        %502 = vmatpush1.bf16.msra.mxu0 0
        %503 = vmatprep.subr.bf16.mxu0 0
        %504 = vmatpush1.bf16.msra.mxu0 0
        %505 = vmatprep.subr.bf16.mxu0 0
        %506 = vmatpush1.bf16.msra.mxu0 0
        %507 = vmatprep.subr.bf16.mxu0 0
        %508 = vmatpush1.bf16.msra.mxu0 0
        %509 = vmatprep.mubr.bf16.mxu0 0
        %510 = vmatmul.mubr.bf16.gmra.mrb[0].mxu0 %v466
        %v511 = vpop.f32.mrb[0].mxu0
        %v512 = vadd.f32 %v414, %v511
        %v513 = vpop.f32.mrb[0].mxu0
        %v514 = vadd.f32 %v414, %v513
        %v515 = vpop.f32.mrb[0].mxu0
        %v516 = vadd.f32 %v418, %v515
        %v517 = vpop.f32.mrb[0].mxu0
        %v518 = vadd.f32 %v418, %v517
        %519 = vmatprep.mubr.bf16.mxu0 0
        %520 = vmatmul.mubr.bf16.gmra.mrb[0].mxu0 %v469
        %v521 = vpop.f32.mrb[0].mxu0
        %v522 = vadd.f32 %v422, %v521
        %v523 = vpop.f32.mrb[0].mxu0
        %v524 = vadd.f32 %v422, %v523
        %v525 = vpop.f32.mrb[0].mxu0
        %v526 = vadd.f32 %v426, %v525
        %v527 = vpop.f32.mrb[0].mxu0
        %v528 = vadd.f32 %v426, %v527
        %529 = vmatprep.mubr.bf16.mxu0 0
        %530 = vmatmul.mubr.bf16.gmra.mrb[0].mxu0 %v472
        %v531 = vpop.f32.mrb[0].mxu0
        %v532 = vadd.f32 %v430, %v531
        %v533 = vpop.f32.mrb[0].mxu0
        %v534 = vadd.f32 %v430, %v533
        %v535 = vpop.f32.mrb[0].mxu0
        %v536 = vadd.f32 %v434, %v535
        %v537 = vpop.f32.mrb[0].mxu0
        %v538 = vadd.f32 %v434, %v537
        %539 = vmatprep.mubr.bf16.mxu0 0
        %540 = vmatmul.mubr.bf16.gmra.mrb[0].mxu0 %v475
        %v541 = vpop.f32.mrb[0].mxu0
        %v542 = vadd.f32 %v438, %v541
        %v543 = vpop.f32.mrb[0].mxu0
        %v544 = vadd.f32 %v438, %v543
        %v545 = vpop.f32.mrb[0].mxu0
        %v546 = vadd.f32 %v442, %v545
        %v547 = vpop.f32.mrb[0].mxu0
        %v548 = vadd.f32 %v442, %v547
        %549 = vdwg.mxu0
        %v550 = vmax.f32 %v512, 0.0
        %v551 = vmax.f32 %v514, 0.0
        %v552 = vmax.f32 %v516, 0.0
        %v553 = vmax.f32 %v518, 0.0
        %v554 = vmax.f32 %v522, 0.0
        %v555 = vmax.f32 %v524, 0.0
        %v556 = vmax.f32 %v526, 0.0
        %v557 = vmax.f32 %v528, 0.0
        %v558 = vmax.f32 %v532, 0.0
        %v559 = vmax.f32 %v534, 0.0
        %v560 = vmax.f32 %v536, 0.0
        %v561 = vmax.f32 %v538, 0.0
        %v562 = vmax.f32 %v542, 0.0
        %v563 = vmax.f32 %v544, 0.0
        %v564 = vmax.f32 %v546, 0.0
        %v565 = vmax.f32 %v548, 0.0
        %v566 = vpack.c.bf16 %v552, %v550
        %v567 = vpack.c.bf16 %v553, %v551
        %v568 = vpack.c.bf16 %v556, %v554
        %v569 = vpack.c.bf16 %v557, %v555
        %v570 = vpack.c.bf16 %v560, %v558
        %v571 = vpack.c.bf16 %v561, %v559
        %v572 = vpack.c.bf16 %v564, %v562
        %v573 = vpack.c.bf16 %v565, %v563
        %574 = vset.pattern.permute.xlu0 3
        %575 = vperm.xlu0 %574, %v239
        %v576 = vpop.permute.xlu0 %575
        %578 = vset.pattern.permute.xlu0 3
        %579 = vperm.xlu0 %578, %v240
        %v580 = vpop.permute.xlu0 %579
        %582 = vset.pattern.permute.xlu0 3
        %583 = vperm.xlu0 %582, %v241
        %v584 = vpop.permute.xlu0 %583
        %586 = vset.pattern.permute.xlu0 3
        %587 = vperm.xlu0 %586, %v242
        %v588 = vpop.permute.xlu0 %587
        %590 = vset.pattern.permute.xlu0 3
        %591 = vperm.xlu0 %590, %v243
        %v592 = vpop.permute.xlu0 %591
        %594 = vset.pattern.permute.xlu0 3
        %595 = vperm.xlu0 %594, %v244
        %v596 = vpop.permute.xlu0 %595
        %598 = vset.pattern.permute.xlu0 3
        %599 = vperm.xlu0 %598, %v245
        %v600 = vpop.permute.xlu0 %599
        %602 = vset.pattern.permute.xlu0 3
        %603 = vperm.xlu0 %602, %v246
        %v604 = vpop.permute.xlu0 %603
        %v614 = vunpack.c.l.b16 %v256
        %v615 = vunpack.c.l.b16 %v257
        %v616 = vunpack.c.l.b16 %v258
        %v617 = vunpack.c.l.b16 %v259
        %v618 = vunpack.c.l.b16 %v260
        %v619 = vunpack.c.l.b16 %v261
        %v620 = vunpack.c.l.b16 %v262
        %v621 = vunpack.c.l.b16 %v263
        %v622 = vpack.c.b16 %v615, %v614
        %v623 = vpack.c.b16 %v617, %v616
        %v624 = vpack.c.b16 %v619, %v618
        %v625 = vpack.c.b16 %v621, %v620
        %v627 = vsel %vm464, %v622, 0
        %v630 = vsel %vm464, %v623, 0
        %v633 = vsel %vm464, %v624, 0
        %v636 = vsel %vm464, %v625, 0
        %638 = vmatprep.subr.bf16.mxu0 %v567
        %639 = vmatpush1.bf16.msra.mxu0 %v566
        %640 = vmatprep.subr.bf16.mxu0 %v569
        %641 = vmatpush1.bf16.msra.mxu0 %v568
        %642 = vmatprep.subr.bf16.mxu0 %v571
        %643 = vmatpush1.bf16.msra.mxu0 %v570
        %644 = vmatprep.subr.bf16.mxu0 %v573
        %645 = vmatpush1.bf16.msra.mxu0 %v572
        %646 = vmatprep.subr.bf16.mxu0 0
        %647 = vmatpush1.bf16.msra.mxu0 0
        %648 = vmatprep.subr.bf16.mxu0 0
        %649 = vmatpush1.bf16.msra.mxu0 0
        %650 = vmatprep.subr.bf16.mxu0 0
        %651 = vmatpush1.bf16.msra.mxu0 0
        %652 = vmatprep.subr.bf16.mxu0 0
        %653 = vmatpush1.bf16.msra.mxu0 0
        %654 = vmatprep.subr.bf16.mxu0 0
        %655 = vmatpush1.bf16.msra.mxu0 0
        %656 = vmatprep.subr.bf16.mxu0 0
        %657 = vmatpush1.bf16.msra.mxu0 0
        %658 = vmatprep.subr.bf16.mxu0 0
        %659 = vmatpush1.bf16.msra.mxu0 0
        %660 = vmatprep.subr.bf16.mxu0 0
        %661 = vmatpush1.bf16.msra.mxu0 0
        %662 = vmatprep.subr.bf16.mxu0 0
        %663 = vmatpush1.bf16.msra.mxu0 0
        %664 = vmatprep.subr.bf16.mxu0 0
        %665 = vmatpush1.bf16.msra.mxu0 0
        %666 = vmatprep.subr.bf16.mxu0 0
        %667 = vmatpush1.bf16.msra.mxu0 0
        %668 = vmatprep.subr.bf16.mxu0 0
        %669 = vmatpush1.bf16.msra.mxu0 0
        %670 = vmatprep.mubr.bf16.mxu0 0
        %671 = vmatmul.mubr.bf16.gmra.mrb[0].mxu0 %v627
        %v672 = vpop.f32.mrb[0].mxu0
        %v673 = vadd.f32 %v576, %v672
        %v674 = vpop.f32.mrb[0].mxu0
        %v675 = vadd.f32 %v576, %v674
        %v676 = vpop.f32.mrb[0].mxu0
        %v677 = vadd.f32 %v580, %v676
        %v678 = vpop.f32.mrb[0].mxu0
        %v679 = vadd.f32 %v580, %v678
        %680 = vmatprep.mubr.bf16.mxu0 0
        %681 = vmatmul.mubr.bf16.gmra.mrb[0].mxu0 %v630
        %v682 = vpop.f32.mrb[0].mxu0
        %v683 = vadd.f32 %v584, %v682
        %v684 = vpop.f32.mrb[0].mxu0
        %v685 = vadd.f32 %v584, %v684
        %v686 = vpop.f32.mrb[0].mxu0
        %v687 = vadd.f32 %v588, %v686
        %v688 = vpop.f32.mrb[0].mxu0
        %v689 = vadd.f32 %v588, %v688
        %690 = vmatprep.mubr.bf16.mxu0 0
        %691 = vmatmul.mubr.bf16.gmra.mrb[0].mxu0 %v633
        %v692 = vpop.f32.mrb[0].mxu0
        %v693 = vadd.f32 %v592, %v692
        %v694 = vpop.f32.mrb[0].mxu0
        %v695 = vadd.f32 %v592, %v694
        %v696 = vpop.f32.mrb[0].mxu0
        %v697 = vadd.f32 %v596, %v696
        %v698 = vpop.f32.mrb[0].mxu0
        %v699 = vadd.f32 %v596, %v698
        %700 = vmatprep.mubr.bf16.mxu0 0
        %701 = vmatmul.mubr.bf16.gmra.mrb[0].mxu0 %v636
        %v702 = vpop.f32.mrb[0].mxu0
        %v703 = vadd.f32 %v600, %v702
        %v704 = vpop.f32.mrb[0].mxu0
        %v705 = vadd.f32 %v600, %v704
        %v706 = vpop.f32.mrb[0].mxu0
        %v707 = vadd.f32 %v604, %v706
        %v708 = vpop.f32.mrb[0].mxu0
        %v709 = vadd.f32 %v604, %v708
        %710 = vdwg.mxu0
        %v711 = vmax.f32 %v673, 0.0
        %v712 = vmax.f32 %v675, 0.0
        %v713 = vmax.f32 %v677, 0.0
        %v714 = vmax.f32 %v679, 0.0
        %v715 = vmax.f32 %v683, 0.0
        %v716 = vmax.f32 %v685, 0.0
        %v717 = vmax.f32 %v687, 0.0
        %v718 = vmax.f32 %v689, 0.0
        %v719 = vmax.f32 %v693, 0.0
        %v720 = vmax.f32 %v695, 0.0
        %v721 = vmax.f32 %v697, 0.0
        %v722 = vmax.f32 %v699, 0.0
        %v723 = vmax.f32 %v703, 0.0
        %v724 = vmax.f32 %v705, 0.0
        %v725 = vmax.f32 %v707, 0.0
        %v726 = vmax.f32 %v709, 0.0
        %v727 = vpack.c.bf16 %v713, %v711
        %v728 = vpack.c.bf16 %v714, %v712
        %v729 = vpack.c.bf16 %v717, %v715
        %v730 = vpack.c.bf16 %v718, %v716
        %v731 = vpack.c.bf16 %v721, %v719
        %v732 = vpack.c.bf16 %v722, %v720
        %v733 = vpack.c.bf16 %v725, %v723
        %v734 = vpack.c.bf16 %v726, %v724
        %735 = vset.pattern.permute.xlu0 4
        %736 = vperm.xlu0 %735, %v239
        %v737 = vpop.permute.xlu0 %736
        %739 = vset.pattern.permute.xlu0 4
        %740 = vperm.xlu0 %739, %v240
        %v741 = vpop.permute.xlu0 %740
        %743 = vset.pattern.permute.xlu0 4
        %744 = vperm.xlu0 %743, %v241
        %v745 = vpop.permute.xlu0 %744
        %747 = vset.pattern.permute.xlu0 4
        %748 = vperm.xlu0 %747, %v242
        %v749 = vpop.permute.xlu0 %748
        %751 = vset.pattern.permute.xlu0 4
        %752 = vperm.xlu0 %751, %v243
        %v753 = vpop.permute.xlu0 %752
        %755 = vset.pattern.permute.xlu0 4
        %756 = vperm.xlu0 %755, %v244
        %v757 = vpop.permute.xlu0 %756
        %759 = vset.pattern.permute.xlu0 4
        %760 = vperm.xlu0 %759, %v245
        %v761 = vpop.permute.xlu0 %760
        %763 = vset.pattern.permute.xlu0 4
        %764 = vperm.xlu0 %763, %v246
        %v765 = vpop.permute.xlu0 %764
        %v775 = vunpack.c.l.b16 %v264
        %v776 = vunpack.c.l.b16 %v265
        %v777 = vunpack.c.l.b16 %v266
        %v778 = vunpack.c.l.b16 %v267
        %v779 = vunpack.c.l.b16 %v268
        %v780 = vunpack.c.l.b16 %v269
        %v781 = vunpack.c.l.b16 %v270
        %v782 = vunpack.c.l.b16 %v271
        %v783 = vpack.c.b16 %v776, %v775
        %v784 = vpack.c.b16 %v778, %v777
        %v785 = vpack.c.b16 %v780, %v779
        %v786 = vpack.c.b16 %v782, %v781
        %v788 = vsel %vm464, %v783, 0
        %v791 = vsel %vm464, %v784, 0
        %v794 = vsel %vm464, %v785, 0
        %v797 = vsel %vm464, %v786, 0
        %799 = vmatprep.subr.bf16.mxu0 %v728
        %800 = vmatpush1.bf16.msra.mxu0 %v727
        %801 = vmatprep.subr.bf16.mxu0 %v730
        %802 = vmatpush1.bf16.msra.mxu0 %v729
        %803 = vmatprep.subr.bf16.mxu0 %v732
        %804 = vmatpush1.bf16.msra.mxu0 %v731
        %805 = vmatprep.subr.bf16.mxu0 %v734
        %806 = vmatpush1.bf16.msra.mxu0 %v733
        %807 = vmatprep.subr.bf16.mxu0 0
        %808 = vmatpush1.bf16.msra.mxu0 0
        %809 = vmatprep.subr.bf16.mxu0 0
        %810 = vmatpush1.bf16.msra.mxu0 0
        %811 = vmatprep.subr.bf16.mxu0 0
        %812 = vmatpush1.bf16.msra.mxu0 0
        %813 = vmatprep.subr.bf16.mxu0 0
        %814 = vmatpush1.bf16.msra.mxu0 0
        %815 = vmatprep.subr.bf16.mxu0 0
        %816 = vmatpush1.bf16.msra.mxu0 0
        %817 = vmatprep.subr.bf16.mxu0 0
        %818 = vmatpush1.bf16.msra.mxu0 0
        %819 = vmatprep.subr.bf16.mxu0 0
        %820 = vmatpush1.bf16.msra.mxu0 0
        %821 = vmatprep.subr.bf16.mxu0 0
        %822 = vmatpush1.bf16.msra.mxu0 0
        %823 = vmatprep.subr.bf16.mxu0 0
        %824 = vmatpush1.bf16.msra.mxu0 0
        %825 = vmatprep.subr.bf16.mxu0 0
        %826 = vmatpush1.bf16.msra.mxu0 0
        %827 = vmatprep.subr.bf16.mxu0 0
        %828 = vmatpush1.bf16.msra.mxu0 0
        %829 = vmatprep.subr.bf16.mxu0 0
        %830 = vmatpush1.bf16.msra.mxu0 0
        %831 = vmatprep.mubr.bf16.mxu0 0
        %832 = vmatmul.mubr.bf16.gmra.mrb[0].mxu0 %v788
        %v833 = vpop.f32.mrb[0].mxu0
        %v834 = vadd.f32 %v737, %v833
        %v835 = vpop.f32.mrb[0].mxu0
        %v836 = vadd.f32 %v737, %v835
        %v837 = vpop.f32.mrb[0].mxu0
        %v838 = vadd.f32 %v741, %v837
        %v839 = vpop.f32.mrb[0].mxu0
        %v840 = vadd.f32 %v741, %v839
        %841 = vmatprep.mubr.bf16.mxu0 0
        %842 = vmatmul.mubr.bf16.gmra.mrb[0].mxu0 %v791
        %v843 = vpop.f32.mrb[0].mxu0
        %v844 = vadd.f32 %v745, %v843
        %v845 = vpop.f32.mrb[0].mxu0
        %v846 = vadd.f32 %v745, %v845
        %v847 = vpop.f32.mrb[0].mxu0
        %v848 = vadd.f32 %v749, %v847
        %v849 = vpop.f32.mrb[0].mxu0
        %v850 = vadd.f32 %v749, %v849
        %851 = vmatprep.mubr.bf16.mxu0 0
        %852 = vmatmul.mubr.bf16.gmra.mrb[0].mxu0 %v794
        %v853 = vpop.f32.mrb[0].mxu0
        %v854 = vadd.f32 %v753, %v853
        %v855 = vpop.f32.mrb[0].mxu0
        %v856 = vadd.f32 %v753, %v855
        %v857 = vpop.f32.mrb[0].mxu0
        %v858 = vadd.f32 %v757, %v857
        %v859 = vpop.f32.mrb[0].mxu0
        %v860 = vadd.f32 %v757, %v859
        %861 = vmatprep.mubr.bf16.mxu0 0
        %862 = vmatmul.mubr.bf16.gmra.mrb[0].mxu0 %v797
        %v863 = vpop.f32.mrb[0].mxu0
        %v864 = vadd.f32 %v761, %v863
        %v865 = vpop.f32.mrb[0].mxu0
        %v866 = vadd.f32 %v761, %v865
        %v867 = vpop.f32.mrb[0].mxu0
        %v868 = vadd.f32 %v765, %v867
        %v869 = vpop.f32.mrb[0].mxu0
        %v870 = vadd.f32 %v765, %v869
        %871 = vdwg.mxu0
        %v872 = vmax.f32 %v834, 0.0
        %v873 = vmax.f32 %v836, 0.0
        %v874 = vmax.f32 %v838, 0.0
        %v875 = vmax.f32 %v840, 0.0
        %v876 = vmax.f32 %v844, 0.0
        %v877 = vmax.f32 %v846, 0.0
        %v878 = vmax.f32 %v848, 0.0
        %v879 = vmax.f32 %v850, 0.0
        %v880 = vmax.f32 %v854, 0.0
        %v881 = vmax.f32 %v856, 0.0
        %v882 = vmax.f32 %v858, 0.0
        %v883 = vmax.f32 %v860, 0.0
        %v884 = vmax.f32 %v864, 0.0
        %v885 = vmax.f32 %v866, 0.0
        %v886 = vmax.f32 %v868, 0.0
        %v887 = vmax.f32 %v870, 0.0
        %888 = vset.pattern.permute.xlu0 5
        %889 = vperm.xlu0 %888, %v239
        %v890 = vpop.permute.xlu0 %889
        %892 = vset.pattern.permute.xlu0 5
        %893 = vperm.xlu0 %892, %v240
        %v894 = vpop.permute.xlu0 %893
        %896 = vset.pattern.permute.xlu0 5
        %897 = vperm.xlu0 %896, %v241
        %v898 = vpop.permute.xlu0 %897
        %900 = vset.pattern.permute.xlu0 5
        %901 = vperm.xlu0 %900, %v242
        %v902 = vpop.permute.xlu0 %901
        %904 = vset.pattern.permute.xlu0 5
        %905 = vperm.xlu0 %904, %v243
        %v906 = vpop.permute.xlu0 %905
        %908 = vset.pattern.permute.xlu0 5
        %909 = vperm.xlu0 %908, %v244
        %v910 = vpop.permute.xlu0 %909
        %912 = vset.pattern.permute.xlu0 5
        %913 = vperm.xlu0 %912, %v245
        %v914 = vpop.permute.xlu0 %913
        %916 = vset.pattern.permute.xlu0 5
        %917 = vperm.xlu0 %916, %v246
        %v918 = vpop.permute.xlu0 %917
        %v920 = vmul.f32 %v890, %v872
        %v921 = vmul.f32 %v890, %v873
        %v922 = vmul.f32 %v894, %v874
        %v923 = vmul.f32 %v894, %v875
        %v924 = vmul.f32 %v898, %v876
        %v925 = vmul.f32 %v898, %v877
        %v926 = vmul.f32 %v902, %v878
        %v927 = vmul.f32 %v902, %v879
        %v928 = vmul.f32 %v906, %v880
        %v929 = vmul.f32 %v906, %v881
        %v930 = vmul.f32 %v910, %v882
        %v931 = vmul.f32 %v910, %v883
        %v932 = vmul.f32 %v914, %v884
        %v933 = vmul.f32 %v914, %v885
        %v934 = vmul.f32 %v918, %v886
        %v935 = vmul.f32 %v918, %v887
        %v936 = vadd.f32 %v920, %v922
        %v937 = vadd.f32 %v936, %v924
        %v938 = vadd.f32 %v937, %v926
        %v939 = vadd.f32 %v938, %v928
        %v940 = vadd.f32 %v939, %v930
        %v941 = vadd.f32 %v940, %v932
        %v942 = vadd.f32 %v941, %v934
        %v943 = vrot.slane %v942, 4
        %v944 = vadd.f32 %v942, %v943
        %v945 = vrot.slane %v944, 2
        %v946 = vadd.f32 %v944, %v945
        %v947 = vrot.slane %v946, 1
        %v948 = vadd.f32 %v946, %v947
        %v949 = vadd.f32 %v921, %v923
        %v950 = vadd.f32 %v949, %v925
        %v951 = vadd.f32 %v950, %v927
        %v952 = vadd.f32 %v951, %v929
        %v953 = vadd.f32 %v952, %v931
        %v954 = vadd.f32 %v953, %v933
        %v955 = vadd.f32 %v954, %v935
        %v956 = vrot.slane %v955, 4
        %v957 = vadd.f32 %v955, %v956
        %v958 = vrot.slane %v957, 2
        %v959 = vadd.f32 %v957, %v958
        %v960 = vrot.slane %v959, 1
        %v961 = vadd.f32 %v959, %v960
        %963 = vset.pattern.permute.xlu0 6
        %964 = vperm.xlu0 %963, %v247
        %v965 = vpop.permute.xlu0 %964
        %v967 = vadd.f32 %v948, %v965
        %v968 = vadd.f32 %v961, %v965
        %v971 = vcombine.low %v967, %v968
        %v973 = vunpack.c.l.s4 1966171168
        %v974 = vunpack.c.0.s8 %v973
        %v975 = vlaneseq
        %v976 = vshrl.u32 %v975, 7
        %v977 = vsub.s32 %v974, %v976
        %v978 = vrot.slane %v971, %v977
        %v980 = vunpack.c.l.s4 1966171168
        %v981 = vunpack.c.0.s8 %v980
        %v982 = vlaneseq
        %v983 = vshrl.u32 %v982, 7
        %v984 = vsub.s32 %v981, %v983
        %v985 = vrot.slane %v978, %v984
        %v987 = vlaneseq
        %vm988 = vcmp.ge.s32.totalorder %v987, 0
        %vm989 = vcmp.lt.s32.totalorder %v987, 256
        %vm990 = vmand %vm988, %vm989
        %991 = vst.msk [vmem:[%s231] sm:$0x3] %vm990, %v985
        %s992 = sand.u32 %s138, 1
        %s993 = scalar_lea.sflag [#allocation4], %s992
        %s994 = sand.u32 %s138, 1
        %s995 = smul.addr %s994, 2
        %s996 = scalar_lea.vmem [#allocation5], %s995
        // Predicated region
        $region45: #{tpu_custom_call.1} parent=39 // pred_check
          %p997 = pneg %p148
        $region46: #{tpu_custom_call.1} parent=39 // pred_check_branch
          %999 = sbr.rel (%p997) target = $region48
        $region47: #{tpu_custom_call.1} parent=39 // pred_region
          %s1000 = smul.u32 2, %s20
          %s1002 = ssub.s32 32, 32
          %1003 = vsyncadd %s993, %s1002
          %s1004 = smul.addr %s1000, 16
          %s1005 = scalar_lea.hbm %s5, %s1004
          %s1007 = sshll.u32 %s996, 4
          %s1008 = int_to_ptr.vmem [resolvable:$true] %s1007
          %1010 = dma.vmem_to_hbm [thread:$0]  %s1008, 32, %s1005, %s993
        $region48: #{tpu_custom_call.1} parent=39 // pred_fallthru
          _
      $region40: #{tpu_custom_call.1} parent=5 // pred_fallthru
        _
      %p1011 = scmp.le.s32.totalorder 2, %s15
      // Predicated region
      $region49: #{tpu_custom_call.1} parent=5 // pred_check
        %p1012 = pneg %p1011
      $region50: #{tpu_custom_call.1} parent=5 // pred_check_branch
        %1014 = sbr.rel (%p1012) target = $region52
      $region51: #{tpu_custom_call.1} parent=5 // pred_region
        %s1015 = ssub.s32 %s15, 2
        // Predicated region
        $region53: #{tpu_custom_call.1} parent=51 // pred_check
          %p1016 = pneg %p154
        $region54: #{tpu_custom_call.1} parent=51 // pred_check_branch
          %1018 = sbr.rel (%p1016) target = $region56
        $region55: #{tpu_custom_call.1} parent=51 // pred_region
          %s1019 = sand.u32 %s139, 1
          %s1020 = scalar_lea.sflag [#allocation4], %s1019
          %s1021 = sand.u32 %s139, 1
          %s1022 = smul.addr %s1021, 2
          %s1023 = scalar_lea.vmem [#allocation5], %s1022
          %1024 = dma.done %s1020, 32
        $region56: #{tpu_custom_call.1} parent=51 // pred_fallthru
          _
      $region52: #{tpu_custom_call.1} parent=5 // pred_fallthru
        _
    $region6: #{tpu_custom_call.1} parent=1 // loop_footer
      %s19 = sadd.s32 1, %s15
    $region7: #{tpu_custom_call.1} parent=1 // loop_footer_branch
      %14 = sbr.rel target = $region3
    $region8: #{tpu_custom_call.1} parent=1 // loop_exit
      _
    %1025 = vsyncpa [#allocation3], 1
    %s1026 = scalar_lea.sflag [#allocation3], 1
    %1027 = vsyncpa %s1026, 1
    %1028 = vsyncpa [#allocation4], 1
    %s1029 = scalar_lea.sflag [#allocation4], 1
    %1030 = vsyncpa %s1029, 1

</llo_original>
